<compile_context>
chip_gen: v7x
topology: tpu7x:2x2x1
jax: 0.10.0
libtpu: 0.0.40
codegen_flags: <defaults>
</compile_context>

<pallas_src>
import functools

import jax
import jax.numpy as jnp
from jax.experimental import pallas as pl
from jax.experimental.pallas import tpu as pltpu

_DKP = 8  # Q/K rows padded to one sublane group so all packed-row slices are 8-aligned.


def _msa_kernel(xc_ref, x_ref, w_ref, b_ref, gamma_ref, out_ref, qkv_ref, *,
                C, tq):
    """One (batch, query-tile) step of channels-first multiscale self-attention.

    xc_ref : (1, 4C, N)  bf16   multiscale concat, channels-first
    x_ref  : (1, C, TQ)  f32    residual slice for this query tile
    w_ref  : (R, 4C)     bf16   packed [Qpad | Kpad | V | ones] weight, R = 2*8 + C + 1
    b_ref  : (R, 1)      f32    packed bias (ones-row bias = 1 -> per-query prob sums)
    gamma  : (1,)        f32    SMEM scalar
    out_ref: (1, C, TQ)  f32
    qkv_ref: (R, N)      f32    scratch; persists across the query-tile grid axis
    """
    qi = pl.program_id(1)

    # Fused QKV projection, computed once per batch (query-tile axis is the
    # innermost "arbitrary" axis, scratch persists across the remaining tiles).
    @pl.when(qi == 0)
    def _():
        xc = xc_ref[0]                                              # (4C, N) bf16
        qkv = jnp.dot(w_ref[...], xc, preferred_element_type=jnp.float32)
        qkv_ref[...] = qkv + b_ref[...]                             # (R, N) f32

    q0 = pl.multiple_of(qi * tq, tq)
    q_t = qkv_ref[pl.ds(0, _DKP), pl.ds(q0, tq)]                    # (8, TQ) f32
    k_t = qkv_ref[pl.ds(_DKP, _DKP), :]                             # (8, N)  f32

    # energy[i, j] = <q_i, k_j>; padded Q/K rows are exactly zero.
    energy = jax.lax.dot_general(
        q_t, k_t, (((0,), (0,)), ((), ())),
        preferred_element_type=jnp.float32)                         # (TQ, N) f32

    # Numerically-stable softmax numerator; normalization deferred to post-AV.
    e_max = jnp.max(energy, axis=-1, keepdims=True)
    p = jnp.exp(energy - e_max).astype(jnp.bfloat16)                # (TQ, N)

    va = qkv_ref[pl.ds(2 * _DKP, C + 1), :].astype(jnp.bfloat16)    # (C+1, N)
    acc = jax.lax.dot_general(
        va, p, (((1,), (1,)), ((), ())),
        preferred_element_type=jnp.float32)                         # (C+1, TQ)

    inv_den = pl.reciprocal(acc[C:C + 1, :], approx=True)           # (1, TQ)
    attn_out = acc[:C, :] * inv_den                                 # (C, TQ)

    gamma = gamma_ref[0]
    out_ref[0] = (gamma * attn_out + x_ref[0]).astype(out_ref.dtype)


def _multiscale_concat(x):
    """avg_pool(s, stride=s) + nearest upsample + concat (NCHW glue)."""
    B, C, H, W = x.shape
    scales = []
    for s in (2, 4, 8):
        pooled = x.reshape(B, C, H // s, s, W // s, s).mean(axis=(3, 5))
        scales.append(jnp.repeat(jnp.repeat(pooled, s, axis=2), s, axis=3))
    scales.append(x)
    return jnp.concatenate(scales, axis=1)                          # (B, 4C, H, W)


def _pack_qkv(params, C):
    """Pack Wq/Wk/Wv (+ biases + a 'ones' row) into one channels-first weight."""
    dk = C // 8
    C4 = 4 * C
    R = 2 * _DKP + C + 1
    w = jnp.zeros((R, C4), jnp.float32)
    b = jnp.zeros((R, 1), jnp.float32)
    w = w.at[0:dk].set(params["wq"])
    w = w.at[_DKP:_DKP + dk].set(params["wk"])
    w = w.at[2 * _DKP:2 * _DKP + C].set(params["wv"])
    b = b.at[0:dk, 0].set(params["bq"])
    b = b.at[_DKP:_DKP + dk, 0].set(params["bk"])
    b = b.at[2 * _DKP:2 * _DKP + C, 0].set(params["bv"])
    b = b.at[2 * _DKP + C, 0].set(1.0)        # ones row -> per-query prob sums
    return w.astype(jnp.bfloat16), b


def multiscale_self_attention(x, params):
    """x: (B, C, H, W) float32; params: see make_params."""
    B, C, H, W = x.shape
    N = H * W
    C4 = 4 * C
    R = 2 * _DKP + C + 1
    tq = 128 if N % 128 == 0 else N
    n_qt = N // tq

    # TODO(synk): the pooled scales are pixel-replicated block means; at large C
    # they could be projected at reduced resolution to cut this concat's HBM
    # traffic further (kept as simple wrapper glue; bf16 already halves it).
    xc = _multiscale_concat(x).reshape(B, C4, N).astype(jnp.bfloat16)
    x_res = x.reshape(B, C, N)

    w_pack, b_pack = _pack_qkv(params, C)
    gamma = params["gamma"].reshape(1).astype(jnp.float32)

    grid_spec = pltpu.PrefetchScalarGridSpec(
        num_scalar_prefetch=0,
        grid=(B, n_qt),
        in_specs=[
            pl.BlockSpec((1, C4, N), lambda b, q: (b, 0, 0)),       # xc (bf16)
            pl.BlockSpec((1, C, tq), lambda b, q: (b, 0, q)),       # residual x
            pl.BlockSpec((R, C4), lambda b, q: (0, 0)),             # packed W (bf16)
            pl.BlockSpec((R, 1), lambda b, q: (0, 0)),              # packed bias
            pl.BlockSpec(memory_space=pltpu.MemorySpace.SMEM),      # gamma scalar
        ],
        out_specs=pl.BlockSpec((1, C, tq), lambda b, q: (b, 0, q)),
        scratch_shapes=[pltpu.VMEM((R, N), jnp.float32)],
    )

    out = pl.pallas_call(
        functools.partial(_msa_kernel, C=C, tq=tq),
        out_shape=jax.ShapeDtypeStruct((B, C, N), jnp.float32),
        grid_spec=grid_spec,
        compiler_params=pltpu.CompilerParams(
            dimension_semantics=("parallel", "arbitrary")),
    )(xc, x_res, w_pack, b_pack, gamma)

    return out.reshape(B, C, H, W)


def make_params(key, in_dim):
    """Synthetic params in PyTorch Conv2d (Cout, Cin) orientation for 1x1 convs.

    gamma is set non-zero (PyTorch init is 0) so the attention branch is exercised.
    """
    C = in_dim
    C4 = 4 * C
    dk = C // 8
    ks = jax.random.split(key, 6)
    scale = 0.1
    return {
        "wq": scale * jax.random.normal(ks[0], (dk, C4), jnp.float32),
        "bq": scale * jax.random.normal(ks[1], (dk,), jnp.float32),
        "wk": scale * jax.random.normal(ks[2], (dk, C4), jnp.float32),
        "bk": scale * jax.random.normal(ks[3], (dk,), jnp.float32),
        "wv": scale * jax.random.normal(ks[4], (C, C4), jnp.float32),
        "bv": scale * jax.random.normal(ks[5], (C,), jnp.float32),
        "gamma": jnp.array([0.5], jnp.float32),
    }


def reference(x, params):
    """Pure-JAX f32 reference mirroring the PyTorch forward."""
    B, C, H, W = x.shape
    N = H * W
    xc = _multiscale_concat(x).reshape(B, 4 * C, N)                  # (B, 4C, N)
    q = jnp.einsum("oc,bcn->bon", params["wq"], xc) + params["bq"][None, :, None]
    k = jnp.einsum("oc,bcn->bon", params["wk"], xc) + params["bk"][None, :, None]
    v = jnp.einsum("oc,bcn->bon", params["wv"], xc) + params["bv"][None, :, None]
    energy = jnp.einsum("bdi,bdj->bij", q, k)                        # (B, N, N)
    attn = jax.nn.softmax(energy, axis=-1)
    out = jnp.einsum("bcj,bij->bci", v, attn)                        # (B, C, N)
    out = params["gamma"][0] * out + x.reshape(B, C, N)
    return out.reshape(B, C, H, W)


if __name__ == "__main__":
    in_dim = 16                       # C; module requires C // 8 >= 1
    B, H, W = 2, 16, 16
    key = jax.random.PRNGKey(0)
    kx, kp = jax.random.split(key)
    x = jax.random.normal(kx, (B, in_dim, H, W), jnp.float32)
    params = make_params(kp, in_dim)

    out = jax.block_until_ready(multiscale_self_attention(x, params))
    ref = jax.block_until_ready(reference(x, params))

    assert out.shape == (B, in_dim, H, W)
    if not jnp.allclose(out, ref, rtol=2e-2, atol=2e-2):
        err = float(jnp.max(jnp.abs(out - ref)))
        raise AssertionError(
            f"Pallas kernel output mismatch vs JAX reference (max abs err {err})")
    print("KERNEL_OK")
</pallas_src>

<mosaic_0001>
module attributes {stable_mosaic.version = 11 : i64} {
  func.func @_msa_kernel(%arg0: i32, %arg1: i32, %arg2: memref<1x64x256xbf16, #tpu.memory_space<vmem>>, %arg3: memref<1x16x128xf32, #tpu.memory_space<vmem>>, %arg4: memref<33x64xbf16, #tpu.memory_space<vmem>>, %arg5: memref<33x1xf32, #tpu.memory_space<vmem>>, %arg6: memref<1xf32, #tpu.memory_space<smem>>, %arg7: memref<1x16x128xf32, #tpu.memory_space<vmem>>, %arg8: memref<33x256xf32, #tpu.memory_space<vmem>>) attributes {dimension_semantics = [#tpu.dimension_semantics<parallel>, #tpu.dimension_semantics<arbitrary>], iteration_bounds = array<i64: 2, 2>, scalar_prefetch = 0 : i64, scratch_operands = 1 : i64, tpu.core_type = #tpu.core_type<tc>, window_params = [{transform_indices = @transform_0, window_bounds = array<i64: 1, 64, 256>}, {transform_indices = @transform_1, window_bounds = array<i64: 1, 16, 128>}, {pipeline_mode = #tpu.pipeline_mode<synchronous>, transform_indices = @transform_2, window_bounds = array<i64: 33, 64>}, {pipeline_mode = #tpu.pipeline_mode<synchronous>, transform_indices = @transform_3, window_bounds = array<i64: 33, 1>}, {transform_indices = @transform_4, window_bounds = array<i64: 1>}, {transform_indices = @transform_5, window_bounds = array<i64: 1, 16, 128>}]} {
    %c0_i32 = arith.constant 0 : i32
    %0 = arith.cmpi eq, %arg1, %c0_i32 : i32
    %1 = arith.extui %0 : i1 to i32
    %c0_i32_0 = arith.constant 0 : i32
    %2 = arith.cmpi ne, %1, %c0_i32_0 : i32
    scf.if %2 {
      %c0_12 = arith.constant 0 : index
      %c0_13 = arith.constant 0 : index
      %c0_14 = arith.constant 0 : index
      %32 = vector.load %arg2[%c0_12, %c0_13, %c0_14] : memref<1x64x256xbf16, #tpu.memory_space<vmem>>, vector<1x64x256xbf16>
      %33 = vector.shape_cast %32 : vector<1x64x256xbf16> to vector<64x256xbf16>
      %c0_15 = arith.constant 0 : index
      %c0_16 = arith.constant 0 : index
      %34 = vector.load %arg4[%c0_15, %c0_16] : memref<33x64xbf16, #tpu.memory_space<vmem>>, vector<33x64xbf16>
      %cst_17 = arith.constant dense<0.000000e+00> : vector<33x256xf32>
      %35 = tpu.matmul %34, %33, %cst_17 {dimension_numbers = #tpu.dot_dimension_numbers<[1], [0], [0], [1], [0, 0, 1, 1], [], []>} : vector<33x64xbf16>, vector<64x256xbf16>, vector<33x256xf32> -> vector<33x256xf32>
      %c0_18 = arith.constant 0 : index
      %c0_19 = arith.constant 0 : index
      %36 = vector.load %arg5[%c0_18, %c0_19] : memref<33x1xf32, #tpu.memory_space<vmem>>, vector<33x1xf32>
      %37 = vector.broadcast %36 : vector<33x1xf32> to vector<33x256xf32>
      %38 = arith.addf %35, %37 : vector<33x256xf32>
      %c0_20 = arith.constant 0 : index
      %c0_21 = arith.constant 0 : index
      %39 = vector.load %arg8[%c0_20, %c0_21] : memref<33x256xf32, #tpu.memory_space<vmem>>, vector<33x256xf32>
      tpu.vector_store %arg8[%c0_20, %c0_21], %38 {strides = array<i32>} : memref<33x256xf32, #tpu.memory_space<vmem>>, vector<33x256xf32>,
    } else {
    }
    %c128_i32 = arith.constant 128 : i32
    %3 = arith.muli %arg1, %c128_i32 : i32
    %4 = tpu.assume_multiple %3, 128 : i32
    %c0 = arith.constant 0 : index
    %5 = arith.index_cast %4 : i32 to index
    %6 = vector.load %arg8[%c0, %5] : memref<33x256xf32, #tpu.memory_space<vmem>>, vector<8x128xf32>
    %c8 = arith.constant 8 : index
    %c0_1 = arith.constant 0 : index
    %7 = vector.load %arg8[%c8, %c0_1] : memref<33x256xf32, #tpu.memory_space<vmem>>, vector<8x256xf32>
    %cst = arith.constant dense<0.000000e+00> : vector<128x256xf32>
    %8 = tpu.matmul %6, %7, %cst {dimension_numbers = #tpu.dot_dimension_numbers<[0], [0], [1], [1], [0, 1, 1, 1], [], []>} : vector<8x128xf32>, vector<8x256xf32>, vector<128x256xf32> -> vector<128x256xf32>
    %cst_2 = arith.constant dense<0xFF800000> : vector<128xf32>
    %9 = vector.multi_reduction <maximumf>, %8, %cst_2 [1] : vector<128x256xf32> to vector<128xf32>
    %10 = vector.shape_cast %9 : vector<128xf32> to vector<128x1xf32>
    %11 = vector.broadcast %10 : vector<128x1xf32> to vector<128x256xf32>
    %12 = arith.subf %8, %11 : vector<128x256xf32>
    %13 = math.exp %12 : vector<128x256xf32>
    %14 = arith.truncf %13 : vector<128x256xf32> to vector<128x256xbf16>
    %c16 = arith.constant 16 : index
    %c0_3 = arith.constant 0 : index
    %15 = vector.load %arg8[%c16, %c0_3] : memref<33x256xf32, #tpu.memory_space<vmem>>, vector<17x256xf32>
    %16 = arith.truncf %15 : vector<17x256xf32> to vector<17x256xbf16>
    %cst_4 = arith.constant dense<0.000000e+00> : vector<17x128xf32>
    %17 = tpu.matmul %16, %14, %cst_4 {dimension_numbers = #tpu.dot_dimension_numbers<[1], [1], [0], [0], [0, 0, 1, 0], [], []>} : vector<17x256xbf16>, vector<128x256xbf16>, vector<17x128xf32> -> vector<17x128xf32>
    %18 = vector.extract_strided_slice %17 {offsets = [16, 0], sizes = [1, 128], strides = [1, 1]} : vector<17x128xf32> to vector<1x128xf32>
    %19 = tpu.reciprocal %18 {approx = true} : vector<1x128xf32> -> vector<1x128xf32>
    %20 = vector.extract_strided_slice %17 {offsets = [0, 0], sizes = [16, 128], strides = [1, 1]} : vector<17x128xf32> to vector<16x128xf32>
    %21 = vector.broadcast %19 : vector<1x128xf32> to vector<16x128xf32>
    %22 = arith.mulf %20, %21 : vector<16x128xf32>
    %c0_5 = arith.constant 0 : index
    %23 = memref.load %arg6[%c0_5] : memref<1xf32, #tpu.memory_space<smem>>
    %24 = vector.broadcast %23 : f32 to vector<16x128xf32>
    %25 = arith.mulf %24, %22 : vector<16x128xf32>
    %c0_6 = arith.constant 0 : index
    %c0_7 = arith.constant 0 : index
    %c0_8 = arith.constant 0 : index
    %26 = vector.load %arg3[%c0_6, %c0_7, %c0_8] : memref<1x16x128xf32, #tpu.memory_space<vmem>>, vector<1x16x128xf32>
    %27 = vector.shape_cast %26 : vector<1x16x128xf32> to vector<16x128xf32>
    %28 = arith.addf %25, %27 : vector<16x128xf32>
    %c0_9 = arith.constant 0 : index
    %c0_10 = arith.constant 0 : index
    %c0_11 = arith.constant 0 : index
    %29 = vector.load %arg7[%c0_9, %c0_10, %c0_11] : memref<1x16x128xf32, #tpu.memory_space<vmem>>, vector<1x16x128xf32>
    %30 = vector.shape_cast %29 : vector<1x16x128xf32> to vector<16x128xf32>
    %31 = vector.shape_cast %28 : vector<16x128xf32> to vector<1x16x128xf32>
    tpu.vector_store %arg7[%c0_9, %c0_10, %c0_11], %31 {strides = array<i32>} : memref<1x16x128xf32, #tpu.memory_space<vmem>>, vector<1x16x128xf32>,
    return
  }
  func.func @transform_0(%arg0: i32, %arg1: i32) -> (i32, i32, i32) {
    %c0_i32 = arith.constant 0 : i32
    %c0_i32_0 = arith.constant 0 : i32
    %c0_i32_1 = arith.constant 0 : i32
    return %arg0, %c0_i32, %c0_i32_0 : i32, i32, i32
  }
  func.func @transform_1(%arg0: i32, %arg1: i32) -> (i32, i32, i32) {
    %c0_i32 = arith.constant 0 : i32
    %c0_i32_0 = arith.constant 0 : i32
    return %arg0, %c0_i32, %arg1 : i32, i32, i32
  }
  func.func @transform_2(%arg0: i32, %arg1: i32) -> (i32, i32) {
    %c0_i32 = arith.constant 0 : i32
    %c0_i32_0 = arith.constant 0 : i32
    %c0_i32_1 = arith.constant 0 : i32
    return %c0_i32, %c0_i32_0 : i32, i32
  }
  func.func @transform_3(%arg0: i32, %arg1: i32) -> (i32, i32) {
    %c0_i32 = arith.constant 0 : i32
    %c0_i32_0 = arith.constant 0 : i32
    %c0_i32_1 = arith.constant 0 : i32
    return %c0_i32, %c0_i32_0 : i32, i32
  }
  func.func @transform_4(%arg0: i32, %arg1: i32) -> i32 {
    %c0_i32 = arith.constant 0 : i32
    %c0_i32_0 = arith.constant 0 : i32
    return %c0_i32 : i32
  }
  func.func @transform_5(%arg0: i32, %arg1: i32) -> (i32, i32, i32) {
    %c0_i32 = arith.constant 0 : i32
    %c0_i32_0 = arith.constant 0 : i32
    return %arg0, %c0_i32, %arg1 : i32, i32, i32
  }
}

</mosaic_0001>

<llo_original>
// kernel: tpu_custom_call.1
$region0: #{tpu_custom_call.1}
  #allocation0 [shape = 'u32[]', space=smem, size = 0x4, offset = 0x4, fixed_abs, tag = 'smem constant byte address 0x4 - core index']
  #allocation1 [shape = 'u32[144,128]{1,0:T(1,128)}', space=vmem, size = 0x12000, scoped, tag = 'internal scratch']
  #allocation2 [shape = 'f32[33,256]{1,0:T(8,128)}', space=vmem, size = 0xa000, scoped, tag = 'scratch operand']
  #allocation3 [shape = 'f32[1]{0:T(128)S(6)}', space=smem, size = 0x200, scoped, tag = 'scoped memory for tpu_custom_call.1']
  %s0 = inlined_call_operand.hbm [shape: bf16[2,64,256], index: 0, kind: input, shape index: {}]
  %s1 = inlined_call_operand.hbm [shape: f32[2,16,256], index: 1, kind: input, shape index: {}]
  %s2 = inlined_call_operand.vmem [shape: bf16[33,64], index: 2, kind: input, shape index: {}]
  %s3 = inlined_call_operand.vmem [shape: f32[33,1], index: 3, kind: input, shape index: {}]
  %s4 = inlined_call_operand.<no memory space> [shape: f32[1], index: 4, kind: input, shape index: {}]
  %s5 = inlined_call_operand.hbm [shape: f32[2,16,256], index: 5, kind: output, shape index: {}]
  %s6 = sld [smem:[#allocation0]]
  $region65: #{tpu_custom_call.1} parent=0
    _
  %s8 = ssub.s32 1, %s6
  %s9 = scalar_select 0, %s8, %s6
  %10 = sst [smem:[#allocation3]] %s4
  $region1: #{tpu_custom_call.1} parent=0
    #allocation4 [shape = 'u8[65536]{0}', space=vmem, size = 0x10000, scoped, tag = 'input window, operand 0']
    #allocation5 [shape = 's32[2]{0}', space=sflag, size = 0x8, scoped, tag = 'scoped memory for tpu_custom_call.1']
    #allocation6 [shape = 's32[2]{0}', space=sflag, size = 0x8, scoped, tag = 'scoped memory for tpu_custom_call.1']
    #allocation7 [shape = 'u8[16384]{0}', space=vmem, size = 0x4000, scoped, tag = 'input window, operand 1']
    #allocation8 [shape = 's32[2]{0}', space=sflag, size = 0x8, scoped, tag = 'scoped memory for tpu_custom_call.1']
    #allocation9 [shape = 'u8[16384]{0}', space=vmem, size = 0x4000, scoped, tag = 'output window, operand 0']
    %11 = vsyncpa [#allocation5], 0
    %s12 = scalar_lea.sflag [#allocation5], 1
    %13 = vsyncpa %s12, 0
    %14 = vsyncpa [#allocation8], 0
    %s15 = scalar_lea.sflag [#allocation8], 1
    %16 = vsyncpa %s15, 0
    %17 = vsyncpa [#allocation6], 0
    %s18 = scalar_lea.sflag [#allocation6], 1
    %19 = vsyncpa %s18, 0
    loop: start=0, step=1, limit=6
    $region2: #{tpu_custom_call.1} parent=1 // loop_pre_header
      _
    $region3: #{tpu_custom_call.1} parent=1 // loop_header
      %s21 = sphi 0, %s25
      %p22 = scmp.ge.s32.totalorder %s21, 6
      %s28 = sphi 0, %s40
      %s29 = sphi 0, %s36
      %s30 = sphi 0, %s28
      %s31 = sphi 0, %s29
      %s32 = sphi 0, %s30
      %s33 = sphi 0, %s31
      %s43 = sphi 0, %s45
      %s46 = sphi 0, %s43
      %s47 = sphi 0, %s46
      %s63 = sphi 0, %s47
      %s71 = sphi 0, %s73
      %s74 = sphi 0, %s71
      %s75 = sphi 0, %s74
      %s91 = sphi 0, %s75
      %s95 = sphi 0, %s95
      %s97 = sphi 0, %s95
      %s98 = sphi 0, %s97
      %s112 = sphi 0, %s98
      %s116 = sphi 0, %s116
      %s118 = sphi 0, %s116
      %s119 = sphi 0, %s118
      %s133 = sphi 0, %s119
      %s137 = sphi 0, %s137
      %s139 = sphi 0, %s137
      %s140 = sphi 0, %s139
      %s154 = sphi 0, %s140
      %s162 = sphi 0, %s164
      %s165 = sphi 0, %s162
      %s166 = sphi 0, %s165
      %s182 = sphi 0, %s166
    $region4: #{tpu_custom_call.1} parent=1 // loop_header_branch
      %24 = sbr.rel (%p22) target = $region8
    $region5: #{tpu_custom_call.1} parent=1 // loop_body
      %s26 = ssub.s32 %s21, 1
      %s27 = ssub.s32 %s21, 2
      %s34 = sadd.s32 1, %s29
      %p35 = scmp.ge.s32.totalorder %s34, 2
      %s36 = scalar_select %p35, 0, %s34
      %s37 = sadd.s32 1, %s28
      %s38 = scalar_select %p35, %s37, %s28
      %p39 = scmp.ge.s32.totalorder %s38, 2
      %s40 = scalar_select %p39, 0, %s38
      %s41 = ssub.s32 %s28, %s40
      %p42 = scmp.eq.s32.totalorder %s41, 0
      %s44 = sadd.s32 %s43, 1
      %s45 = scalar_select %p42, %s43, %s44
      %p48 = pneg %p42
      %p49 = scmp.eq.s32.totalorder %s21, 3
      %p50 = por %p48, %p49
      %p51 = scmp.ne.s32.totalorder %s43, %s46
      %p52 = scmp.eq.s32.totalorder %s21, 0
      %p53 = por %p51, %p52
      %p54 = scmp.ne.s32.totalorder %s43, %s46
      %p55 = scmp.eq.s32.totalorder %s26, 3
      %p56 = por %p54, %p55
      %p57 = scmp.ne.s32.totalorder %s46, %s47
      %p58 = scmp.eq.s32.totalorder %s26, 0
      %p59 = por %p57, %p58
      %p60 = scmp.ne.s32.totalorder %s46, %s47
      %p61 = scmp.eq.s32.totalorder %s27, 3
      %p62 = por %p60, %p61
      %p64 = scmp.ne.s32.totalorder %s47, %s63
      %p65 = scmp.eq.s32.totalorder %s27, 0
      %p66 = por %p64, %p65
      %s67 = ssub.s32 %s28, %s40
      %s68 = ssub.s32 %s29, %s36
      %s69 = sor.u32 %s67, %s68
      %p70 = scmp.eq.s32.totalorder %s69, 0
      %s72 = sadd.s32 %s71, 1
      %s73 = scalar_select %p70, %s71, %s72
      %p76 = pneg %p70
      %p77 = scmp.eq.s32.totalorder %s21, 3
      %p78 = por %p76, %p77
      %p79 = scmp.ne.s32.totalorder %s71, %s74
      %p80 = scmp.eq.s32.totalorder %s21, 0
      %p81 = por %p79, %p80
      %p82 = scmp.ne.s32.totalorder %s71, %s74
      %p83 = scmp.eq.s32.totalorder %s26, 3
      %p84 = por %p82, %p83
      %p85 = scmp.ne.s32.totalorder %s74, %s75
      %p86 = scmp.eq.s32.totalorder %s26, 0
      %p87 = por %p85, %p86
      %p88 = scmp.ne.s32.totalorder %s74, %s75
      %p89 = scmp.eq.s32.totalorder %s27, 3
      %p90 = por %p88, %p89
      %p92 = scmp.ne.s32.totalorder %s75, %s91
      %p93 = scmp.eq.s32.totalorder %s27, 0
      %p94 = por %p92, %p93
      %s96 = sadd.s32 %s95, 1
      %p99 = scmp.eq.s32.totalorder %s21, 3
      %p100 = scmp.ne.s32.totalorder %s95, %s97
      %p101 = scmp.eq.s32.totalorder %s21, 0
      %p102 = por %p100, %p101
      %p103 = scmp.ne.s32.totalorder %s95, %s97
      %p104 = scmp.eq.s32.totalorder %s26, 3
      %p105 = por %p103, %p104
      %p106 = scmp.ne.s32.totalorder %s97, %s98
      %p107 = scmp.eq.s32.totalorder %s26, 0
      %p108 = por %p106, %p107
      %p109 = scmp.ne.s32.totalorder %s97, %s98
      %p110 = scmp.eq.s32.totalorder %s27, 3
      %p111 = por %p109, %p110
      %p113 = scmp.ne.s32.totalorder %s98, %s112
      %p114 = scmp.eq.s32.totalorder %s27, 0
      %p115 = por %p113, %p114
      %s117 = sadd.s32 %s116, 1
      %p120 = scmp.eq.s32.totalorder %s21, 3
      %p121 = scmp.ne.s32.totalorder %s116, %s118
      %p122 = scmp.eq.s32.totalorder %s21, 0
      %p123 = por %p121, %p122
      %p124 = scmp.ne.s32.totalorder %s116, %s118
      %p125 = scmp.eq.s32.totalorder %s26, 3
      %p126 = por %p124, %p125
      %p127 = scmp.ne.s32.totalorder %s118, %s119
      %p128 = scmp.eq.s32.totalorder %s26, 0
      %p129 = por %p127, %p128
      %p130 = scmp.ne.s32.totalorder %s118, %s119
      %p131 = scmp.eq.s32.totalorder %s27, 3
      %p132 = por %p130, %p131
      %p134 = scmp.ne.s32.totalorder %s119, %s133
      %p135 = scmp.eq.s32.totalorder %s27, 0
      %p136 = por %p134, %p135
      %s138 = sadd.s32 %s137, 1
      %p141 = scmp.eq.s32.totalorder %s21, 3
      %p142 = scmp.ne.s32.totalorder %s137, %s139
      %p143 = scmp.eq.s32.totalorder %s21, 0
      %p144 = por %p142, %p143
      %p145 = scmp.ne.s32.totalorder %s137, %s139
      %p146 = scmp.eq.s32.totalorder %s26, 3
      %p147 = por %p145, %p146
      %p148 = scmp.ne.s32.totalorder %s139, %s140
      %p149 = scmp.eq.s32.totalorder %s26, 0
      %p150 = por %p148, %p149
      %p151 = scmp.ne.s32.totalorder %s139, %s140
      %p152 = scmp.eq.s32.totalorder %s27, 3
      %p153 = por %p151, %p152
      %p155 = scmp.ne.s32.totalorder %s140, %s154
      %p156 = scmp.eq.s32.totalorder %s27, 0
      %p157 = por %p155, %p156
      %s158 = ssub.s32 %s28, %s40
      %s159 = ssub.s32 %s29, %s36
      %s160 = sor.u32 %s158, %s159
      %p161 = scmp.eq.s32.totalorder %s160, 0
      %s163 = sadd.s32 %s162, 1
      %s164 = scalar_select %p161, %s162, %s163
      %p167 = pneg %p161
      %p168 = scmp.eq.s32.totalorder %s21, 3
      %p169 = por %p167, %p168
      %p170 = scmp.ne.s32.totalorder %s162, %s165
      %p171 = scmp.eq.s32.totalorder %s21, 0
      %p172 = por %p170, %p171
      %p173 = scmp.ne.s32.totalorder %s162, %s165
      %p174 = scmp.eq.s32.totalorder %s26, 3
      %p175 = por %p173, %p174
      %p176 = scmp.ne.s32.totalorder %s165, %s166
      %p177 = scmp.eq.s32.totalorder %s26, 0
      %p178 = por %p176, %p177
      %p179 = scmp.ne.s32.totalorder %s165, %s166
      %p180 = scmp.eq.s32.totalorder %s27, 3
      %p181 = por %p179, %p180
      %p183 = scmp.ne.s32.totalorder %s166, %s182
      %p184 = scmp.eq.s32.totalorder %s27, 0
      %p185 = por %p183, %p184
      %p186 = scmp.le.s32.totalorder 1, %s21
      %p187 = scmp.lt.s32.totalorder %s21, 5
      %p188 = pnand %p186, %p187
      %p189 = pneg %p188
      // Predicated region
      $region9: #{tpu_custom_call.1} parent=5 // pred_check
        _
      $region10: #{tpu_custom_call.1} parent=5 // pred_check_branch
        %191 = sbr.rel (%p188) target = $region12
      $region11: #{tpu_custom_call.1} parent=5 // pred_region
        %s192 = ssub.s32 %s21, 1
        // Predicated region
        $region13: #{tpu_custom_call.1} parent=11 // pred_check
          %p193 = pneg %p108
        $region14: #{tpu_custom_call.1} parent=11 // pred_check_branch
          %195 = sbr.rel (%p193) target = $region16
        $region15: #{tpu_custom_call.1} parent=11 // pred_region
          _
        $region16: #{tpu_custom_call.1} parent=11 // pred_fallthru
          _
        // Predicated region
        $region17: #{tpu_custom_call.1} parent=11 // pred_check
          %p196 = pneg %p129
        $region18: #{tpu_custom_call.1} parent=11 // pred_check_branch
          %198 = sbr.rel (%p196) target = $region20
        $region19: #{tpu_custom_call.1} parent=11 // pred_region
          _
        $region20: #{tpu_custom_call.1} parent=11 // pred_fallthru
          _
        // Predicated region
        $region21: #{tpu_custom_call.1} parent=11 // pred_check
          %p199 = pneg %p150
        $region22: #{tpu_custom_call.1} parent=11 // pred_check_branch
          %201 = sbr.rel (%p199) target = $region24
        $region23: #{tpu_custom_call.1} parent=11 // pred_region
          _
        $region24: #{tpu_custom_call.1} parent=11 // pred_fallthru
          _
      $region12: #{tpu_custom_call.1} parent=5 // pred_fallthru
        _
      %p202 = scmp.lt.s32.totalorder %s21, 4
      // Predicated region
      $region25: #{tpu_custom_call.1} parent=5 // pred_check
        %p203 = pneg %p202
      $region26: #{tpu_custom_call.1} parent=5 // pred_check_branch
        %205 = sbr.rel (%p203) target = $region28
      $region27: #{tpu_custom_call.1} parent=5 // pred_region
        // Predicated region
        $region29: #{tpu_custom_call.1} parent=27 // pred_check
          %p206 = pneg %p53
        $region30: #{tpu_custom_call.1} parent=27 // pred_check_branch
          %208 = sbr.rel (%p206) target = $region32
        $region31: #{tpu_custom_call.1} parent=27 // pred_region
          %s209 = sand.u32 %s43, 1
          %s210 = scalar_lea.sflag [#allocation5], %s209
          %s211 = sand.u32 %s43, 1
          %s212 = smul.addr %s211, 64
          %s213 = scalar_lea.vmem [#allocation4], %s212
          %s215 = ssub.s32 1024, 1024
          %216 = vsyncadd %s210, %s215
          %s217 = smul.addr %s28, 16
          %s218 = smul.addr %s217, 64
          %s219 = scalar_lea.hbm %s0, %s218
          %s220 = sshll.u32 %s213, 4
          %s221 = int_to_ptr.vmem [resolvable:$true] %s220
          %226 = dma.hbm_to_vmem [thread:$0]  %s219, 1024, %s221, %s210, 128, 128, 8
        $region32: #{tpu_custom_call.1} parent=27 // pred_fallthru
          _
        // Predicated region
        $region33: #{tpu_custom_call.1} parent=27 // pred_check
          %p227 = pneg %p81
        $region34: #{tpu_custom_call.1} parent=27 // pred_check_branch
          %229 = sbr.rel (%p227) target = $region36
        $region35: #{tpu_custom_call.1} parent=27 // pred_region
          %s230 = sand.u32 %s71, 1
          %s231 = scalar_lea.sflag [#allocation8], %s230
          %s232 = sand.u32 %s71, 1
          %s233 = smul.addr %s232, 16
          %s234 = scalar_lea.vmem [#allocation7], %s233
          %s236 = ssub.s32 256, 256
          %237 = vsyncadd %s231, %s236
          %s238 = smul.addr %s28, 4
          %s239 = sadd.s32 %s29, %s238
          %s240 = smul.addr %s239, 128
          %s241 = scalar_lea.hbm %s1, %s240
          %s242 = sshll.u32 %s234, 4
          %s243 = int_to_ptr.vmem [resolvable:$true] %s242
          %248 = dma.hbm_to_vmem [thread:$0]  %s241, 256, %s243, %s231, 256, 128, 8
        $region36: #{tpu_custom_call.1} parent=27 // pred_fallthru
          _
      $region28: #{tpu_custom_call.1} parent=5 // pred_fallthru
        _
      %p249 = scmp.le.s32.totalorder 1, %s21
      %p250 = scmp.lt.s32.totalorder %s21, 5
      %p251 = pnand %p249, %p250
      %p252 = pneg %p251
      // Predicated region
      $region37: #{tpu_custom_call.1} parent=5 // pred_check
        _
      $region38: #{tpu_custom_call.1} parent=5 // pred_check_branch
        %254 = sbr.rel (%p251) target = $region40
      $region39: #{tpu_custom_call.1} parent=5 // pred_region
        %s255 = ssub.s32 %s21, 1
        %s256 = sand.u32 %s46, 1
        %s257 = scalar_lea.sflag [#allocation5], %s256
        %s258 = sand.u32 %s46, 1
        %s259 = smul.addr %s258, 64
        %s260 = scalar_lea.vmem [#allocation4], %s259
        // Predicated region
        $region41: #{tpu_custom_call.1} parent=39 // pred_check
          %p261 = pneg %p59
        $region42: #{tpu_custom_call.1} parent=39 // pred_check_branch
          %263 = sbr.rel (%p261) target = $region44
        $region43: #{tpu_custom_call.1} parent=39 // pred_region
          %264 = dma.done %s257, 1024
        $region44: #{tpu_custom_call.1} parent=39 // pred_fallthru
          _
        %s265 = sand.u32 %s74, 1
        %s266 = scalar_lea.sflag [#allocation8], %s265
        %s267 = sand.u32 %s74, 1
        %s268 = smul.addr %s267, 16
        %s269 = scalar_lea.vmem [#allocation7], %s268
        // Predicated region
        $region45: #{tpu_custom_call.1} parent=39 // pred_check
          %p270 = pneg %p87
        $region46: #{tpu_custom_call.1} parent=39 // pred_check_branch
          %272 = sbr.rel (%p270) target = $region48
        $region47: #{tpu_custom_call.1} parent=39 // pred_region
          %273 = dma.done %s266, 256
        $region48: #{tpu_custom_call.1} parent=39 // pred_fallthru
          _
        %s274 = sand.u32 %s46, 1
        %s275 = scalar_lea.sflag [#allocation5], %s274
        %s276 = sand.u32 %s46, 1
        %s277 = smul.addr %s276, 64
        %s278 = scalar_lea.vmem [#allocation4], %s277
        %p279 = pneg %p59
        %p280 = pneg %p56
        %s281 = sand.u32 %s74, 1
        %s282 = scalar_lea.sflag [#allocation8], %s281
        %s283 = sand.u32 %s74, 1
        %s284 = smul.addr %s283, 16
        %s285 = scalar_lea.vmem [#allocation7], %s284
        %p286 = pneg %p87
        %p287 = pneg %p84
        %p288 = pneg %p108
        %p289 = pneg %p105
        %p290 = pneg %p129
        %p291 = pneg %p126
        %p292 = pneg %p150
        %p293 = pneg %p147
        %p294 = pneg %p178
        %p295 = pneg %p175
        %s296 = sand.u32 %s165, 1
        %s297 = scalar_lea.sflag [#allocation6], %s296
        %s298 = sand.u32 %s165, 1
        %s299 = smul.addr %s298, 16
        %s300 = scalar_lea.vmem [#allocation9], %s299
        %p302 = scmp.eq.s32.totalorder %s31, 0
        // Predicated region
        $region49: #{tpu_custom_call.1} parent=39 // pred_check
          %p303 = pneg %p302
        $region50: #{tpu_custom_call.1} parent=39 // pred_check_branch
          %305 = sbr.rel (%p303) target = $region52
        $region51: #{tpu_custom_call.1} parent=39 // pred_region
          %v306 = vld [vmem:[%s260] sm:$0xff]
          %v307 = vld [vmem:[%s260 + $0x8] sm:$0xff]
          %v308 = vld [vmem:[%s260 + $0x10] sm:$0xff]
          %v309 = vld [vmem:[%s260 + $0x18] sm:$0xff]
          %v310 = vld [vmem:[%s260 + $0x20] sm:$0xff]
          %v311 = vld [vmem:[%s260 + $0x28] sm:$0xff]
          %v312 = vld [vmem:[%s260 + $0x30] sm:$0xff]
          %v313 = vld [vmem:[%s260 + $0x38] sm:$0xff]
          %v314 = vld [vmem:[%s2] sm:$0xf]
          %v315 = vld [vmem:[%s2 + $0x4] sm:$0xf]
          %v316 = vld [vmem:[%s2 + $0x8] sm:$0xf]
          %v317 = vld [vmem:[%s2 + $0xc] sm:$0xf]
          %v318 = vld [vmem:[%s2 + $0x10] sm:$0x1]
          %v319 = vld [vmem:[%s3] sm:$0xff]
          %v320 = vld [vmem:[%s3 + $0x8] sm:$0xff]
          %v321 = vld [vmem:[%s3 + $0x10] sm:$0xff]
          %v322 = vld [vmem:[%s3 + $0x18] sm:$0xff]
          %v323 = vld [vmem:[%s3 + $0x20] sm:$0x1]
          %325 = vset.pattern.permute.xlu0 0
          %326 = vperm.xlu0 %325, %v319
          %v327 = vpop.permute.xlu0 %326
          %330 = vset.pattern.permute.xlu0 0
          %331 = vperm.xlu0 %330, %v320
          %v332 = vpop.permute.xlu0 %331
          %335 = vset.pattern.permute.xlu0 0
          %336 = vperm.xlu0 %335, %v321
          %v337 = vpop.permute.xlu0 %336
          %340 = vset.pattern.permute.xlu0 0
          %341 = vperm.xlu0 %340, %v322
          %v342 = vpop.permute.xlu0 %341
          %345 = vset.pattern.permute.xlu0 0
          %346 = vperm.xlu0 %345, %v323
          %v347 = vpop.permute.xlu0 %346
          %v354 = vunpack.c.l.b16 %v314
          %v355 = vunpack.c.l.b16 %v315
          %v356 = vunpack.c.l.b16 %v316
          %v357 = vunpack.c.l.b16 %v317
          %v358 = vunpack.c.l.b16 %v318
          %v359 = vpack.c.b16 %v355, %v354
          %v360 = vpack.c.b16 %v357, %v356
          %v361 = vpack.c.b16 %v358, %v358
          %v370 = vunpack.c.l.b16 %v306
          %v371 = vunpack.c.h.b16 %v306
          %v372 = vunpack.c.l.b16 %v307
          %v373 = vunpack.c.h.b16 %v307
          %v374 = vunpack.c.l.b16 %v308
          %v375 = vunpack.c.h.b16 %v308
          %v376 = vunpack.c.l.b16 %v309
          %v377 = vunpack.c.h.b16 %v309
          %v378 = vunpack.c.l.b16 %v310
          %v379 = vunpack.c.h.b16 %v310
          %v380 = vunpack.c.l.b16 %v311
          %v381 = vunpack.c.h.b16 %v311
          %v382 = vunpack.c.l.b16 %v312
          %v383 = vunpack.c.h.b16 %v312
          %v384 = vunpack.c.l.b16 %v313
          %v385 = vunpack.c.h.b16 %v313
          %v386 = vpack.c.b16 %v372, %v370
          %v387 = vpack.c.b16 %v373, %v371
          %v388 = vpack.c.b16 %v376, %v374
          %v389 = vpack.c.b16 %v377, %v375
          %v390 = vpack.c.b16 %v380, %v378
          %v391 = vpack.c.b16 %v381, %v379
          %v392 = vpack.c.b16 %v384, %v382
          %v393 = vpack.c.b16 %v385, %v383
          %vm402 = vcmask 523264
          %v404 = vsel %vm402, %v359, 0
          %v407 = vsel %vm402, %v360, 0
          %v410 = vsel %vm402, %v361, 0
          %412 = vmatprep.subr.bf16.mxu0 %v387
          %413 = vmatpush1.bf16.msra.mxu0 %v386
          %414 = vmatprep.subr.bf16.mxu0 %v389
          %415 = vmatpush1.bf16.msra.mxu0 %v388
          %416 = vmatprep.subr.bf16.mxu0 %v391
          %417 = vmatpush1.bf16.msra.mxu0 %v390
          %418 = vmatprep.subr.bf16.mxu0 %v393
          %419 = vmatpush1.bf16.msra.mxu0 %v392
          %420 = vmatprep.subr.bf16.mxu0 0
          %421 = vmatpush1.bf16.msra.mxu0 0
          %422 = vmatprep.subr.bf16.mxu0 0
          %423 = vmatpush1.bf16.msra.mxu0 0
          %424 = vmatprep.subr.bf16.mxu0 0
          %425 = vmatpush1.bf16.msra.mxu0 0
          %426 = vmatprep.subr.bf16.mxu0 0
          %427 = vmatpush1.bf16.msra.mxu0 0
          %428 = vmatprep.subr.bf16.mxu0 0
          %429 = vmatpush1.bf16.msra.mxu0 0
          %430 = vmatprep.subr.bf16.mxu0 0
          %431 = vmatpush1.bf16.msra.mxu0 0
          %432 = vmatprep.subr.bf16.mxu0 0
          %433 = vmatpush1.bf16.msra.mxu0 0
          %434 = vmatprep.subr.bf16.mxu0 0
          %435 = vmatpush1.bf16.msra.mxu0 0
          %436 = vmatprep.subr.bf16.mxu0 0
          %437 = vmatpush1.bf16.msra.mxu0 0
          %438 = vmatprep.subr.bf16.mxu0 0
          %439 = vmatpush1.bf16.msra.mxu0 0
          %440 = vmatprep.subr.bf16.mxu0 0
          %441 = vmatpush1.bf16.msra.mxu0 0
          %442 = vmatprep.subr.bf16.mxu0 0
          %443 = vmatpush1.bf16.msra.mxu0 0
          %444 = vmatprep.mubr.bf16.mxu0 0
          %445 = vmatmul.mubr.bf16.gmra.mrb[0].mxu0 %v404
          %v446 = vpop.f32.mrb[0].mxu0
          %v447 = vadd.f32 %v327, %v446
          %v448 = vpop.f32.mrb[0].mxu0
          %v449 = vadd.f32 %v327, %v448
          %v450 = vpop.f32.mrb[0].mxu0
          %v451 = vadd.f32 %v332, %v450
          %v452 = vpop.f32.mrb[0].mxu0
          %v453 = vadd.f32 %v332, %v452
          %454 = vmatprep.mubr.bf16.mxu0 0
          %455 = vmatmul.mubr.bf16.gmra.mrb[0].mxu0 %v407
          %v456 = vpop.f32.mrb[0].mxu0
          %v457 = vadd.f32 %v337, %v456
          %v458 = vpop.f32.mrb[0].mxu0
          %v459 = vadd.f32 %v337, %v458
          %v460 = vpop.f32.mrb[0].mxu0
          %v461 = vadd.f32 %v342, %v460
          %v462 = vpop.f32.mrb[0].mxu0
          %v463 = vadd.f32 %v342, %v462
          %464 = vmatprep.mubr.bf16.mxu0 0
          %465 = vmatmul.mubr.bf16.gmra.mrb[0].mxu0 %v410
          %v466 = vpop.f32.mrb[0].mxu0
          %v467 = vadd.f32 %v347, %v466
          %v468 = vpop.f32.mrb[0].mxu0
          %v469 = vadd.f32 %v347, %v468
          %v470 = vpop.f32.mrb[0].mxu0
          %v471 = vpop.f32.mrb[0].mxu0
          %472 = vdwg.mxu0
          %473 = vst [vmem:[#allocation2] sm:$0xff] %v447
          %474 = vst [vmem:[#allocation2 + $0x8] sm:$0xff] %v449
          %475 = vst [vmem:[#allocation2 + $0x10] sm:$0xff] %v451
          %476 = vst [vmem:[#allocation2 + $0x18] sm:$0xff] %v453
          %477 = vst [vmem:[#allocation2 + $0x20] sm:$0xff] %v457
          %478 = vst [vmem:[#allocation2 + $0x28] sm:$0xff] %v459
          %479 = vst [vmem:[#allocation2 + $0x30] sm:$0xff] %v461
          %480 = vst [vmem:[#allocation2 + $0x38] sm:$0xff] %v463
          %481 = vst [vmem:[#allocation2 + $0x40] sm:$0x1] %v467
          %482 = vst [vmem:[#allocation2 + $0x48] sm:$0x1] %v469
        $region52: #{tpu_custom_call.1} parent=39 // pred_fallthru
          _
        %s483 = smul.u32 %s31, 128
        %s484 = sshra.s32 %s483, 7
        %s485 = sand.u32 %s483, 127
        %s486 = smul.addr %s484, 8
        %s487 = scalar_lea.vmem [#allocation2], %s486
        %v488 = vld [vmem:[%s487] sm:$0xff]
        %v489 = vld [vmem:[#allocation2 + $0x10] sm:$0xff]
        %v490 = vld [vmem:[#allocation2 + $0x18] sm:$0xff]
        %491 = vxpose.xlu0.b32.start [1/16] %v488, 128
        %492 = vxpose.xlu0.b32.cont [2/16] 0.0, 128
        %493 = vxpose.xlu0.b32.cont [3/16] 0.0, 128
        %494 = vxpose.xlu0.b32.cont [4/16] 0.0, 128
        %495 = vxpose.xlu0.b32.cont [5/16] 0.0, 128
        %496 = vxpose.xlu0.b32.cont [6/16] 0.0, 128
        %497 = vxpose.xlu0.b32.cont [7/16] 0.0, 128
        %498 = vxpose.xlu0.b32.cont [8/16] 0.0, 128
        %499 = vxpose.xlu0.b32.cont [9/16] 0.0, 128
        %500 = vxpose.xlu0.b32.cont [10/16] 0.0, 128
        %501 = vxpose.xlu0.b32.cont [11/16] 0.0, 128
        %502 = vxpose.xlu0.b32.cont [12/16] 0.0, 128
        %503 = vxpose.xlu0.b32.cont [13/16] 0.0, 128
        %504 = vxpose.xlu0.b32.cont [14/16] 0.0, 128
        %505 = vxpose.xlu0.b32.cont [15/16] 0.0, 128
        %506 = vxpose.xlu0.b32.end [16/16] 0.0, 128
        %v507 = vpop.trf.xlu0
        %v508 = vpop.trf.xlu0
        %v509 = vpop.trf.xlu0
        %v510 = vpop.trf.xlu0
        %v511 = vpop.trf.xlu0
        %v512 = vpop.trf.xlu0
        %v513 = vpop.trf.xlu0
        %v514 = vpop.trf.xlu0
        %v515 = vpop.trf.xlu0
        %v516 = vpop.trf.xlu0
        %v517 = vpop.trf.xlu0
        %v518 = vpop.trf.xlu0
        %v519 = vpop.trf.xlu0
        %v520 = vpop.trf.xlu0
        %v521 = vpop.trf.xlu0
        %v522 = vpop.trf.xlu0
        %vm523 = vcmask 64512
        %v525 = vsel %vm523, %v507, 0
        %v528 = vsel %vm523, %v508, 0
        %v531 = vsel %vm523, %v509, 0
        %v534 = vsel %vm523, %v510, 0
        %v537 = vsel %vm523, %v511, 0
        %v540 = vsel %vm523, %v512, 0
        %v543 = vsel %vm523, %v513, 0
        %v546 = vsel %vm523, %v514, 0
        %v549 = vsel %vm523, %v515, 0
        %v552 = vsel %vm523, %v516, 0
        %v555 = vsel %vm523, %v517, 0
        %v558 = vsel %vm523, %v518, 0
        %v561 = vsel %vm523, %v519, 0
        %v564 = vsel %vm523, %v520, 0
        %v567 = vsel %vm523, %v521, 0
        %v570 = vsel %vm523, %v522, 0
        %572 = vmatprep.subr.mxu0 %v490
        %573 = vmatpush1.msra.mxu0 %v489
        %574 = vmatprep.subr.mxu0 0.0
        %575 = vmatpush1.msra.mxu0 0.0
        %576 = vmatprep.subr.mxu0 0.0
        %577 = vmatpush1.msra.mxu0 0.0
        %578 = vmatprep.subr.mxu0 0.0
        %579 = vmatpush1.msra.mxu0 0.0
        %580 = vmatprep.subr.mxu0 0.0
        %581 = vmatpush1.msra.mxu0 0.0
        %582 = vmatprep.subr.mxu0 0.0
        %583 = vmatpush1.msra.mxu0 0.0
        %584 = vmatprep.subr.mxu0 0.0
        %585 = vmatpush1.msra.mxu0 0.0
        %586 = vmatprep.subr.mxu0 0.0
        %587 = vmatpush1.msra.mxu0 0.0
        %588 = vmatprep.subr.mxu0 0.0
        %589 = vmatpush1.msra.mxu0 0.0
        %590 = vmatprep.subr.mxu0 0.0
        %591 = vmatpush1.msra.mxu0 0.0
        %592 = vmatprep.subr.mxu0 0.0
        %593 = vmatpush1.msra.mxu0 0.0
        %594 = vmatprep.subr.mxu0 0.0
        %595 = vmatpush1.msra.mxu0 0.0
        %596 = vmatprep.subr.mxu0 0.0
        %597 = vmatpush1.msra.mxu0 0.0
        %598 = vmatprep.subr.mxu0 0.0
        %599 = vmatpush1.msra.mxu0 0.0
        %600 = vmatprep.subr.mxu0 0.0
        %601 = vmatpush1.msra.mxu0 0.0
        %602 = vmatprep.subr.mxu0 0.0
        %603 = vmatpush1.msra.mxu0 0.0
        %604 = vmatprep.subr.mxu0 0.0
        %605 = vmatpush1.msra.mxu0 0.0
        %606 = vmatprep.subr.mxu0 0.0
        %607 = vmatpush1.msra.mxu0 0.0
        %608 = vmatprep.subr.mxu0 0.0
        %609 = vmatpush1.msra.mxu0 0.0
        %610 = vmatprep.subr.mxu0 0.0
        %611 = vmatpush1.msra.mxu0 0.0
        %612 = vmatprep.subr.mxu0 0.0
        %613 = vmatpush1.msra.mxu0 0.0
        %614 = vmatprep.subr.mxu0 0.0
        %615 = vmatpush1.msra.mxu0 0.0
        %616 = vmatprep.subr.mxu0 0.0
        %617 = vmatpush1.msra.mxu0 0.0
        %618 = vmatprep.subr.mxu0 0.0
        %619 = vmatpush1.msra.mxu0 0.0
        %620 = vmatprep.subr.mxu0 0.0
        %621 = vmatpush1.msra.mxu0 0.0
        %622 = vmatprep.subr.mxu0 0.0
        %623 = vmatpush1.msra.mxu0 0.0
        %624 = vmatprep.subr.mxu0 0.0
        %625 = vmatpush1.msra.mxu0 0.0
        %626 = vmatprep.subr.mxu0 0.0
        %627 = vmatpush1.msra.mxu0 0.0
        %628 = vmatprep.subr.mxu0 0.0
        %629 = vmatpush1.msra.mxu0 0.0
        %630 = vmatprep.subr.mxu0 0.0
        %631 = vmatpush1.msra.mxu0 0.0
        %632 = vmatprep.subr.mxu0 0.0
        %633 = vmatpush1.msra.mxu0 0.0
        %634 = vmatprep.subr.mxu0 0.0
        %635 = vmatpush1.msra.mxu0 0.0
        %636 = vmatprep.mubr.f32.mxu0 0.0
        %637 = vmatmul.mubr.f32.gmra.mrb[0].mxu0 %v525
        %v638 = vpop.f32.mrb[0].mxu0
        %v639 = vadd.f32 0.0, %v638
        %v640 = vpop.f32.mrb[0].mxu0
        %v641 = vadd.f32 0.0, %v640
        %642 = vmatprep.mubr.f32.mxu0 0.0
        %643 = vmatmul.mubr.f32.gmra.mrb[0].mxu0 %v528
        %v644 = vpop.f32.mrb[0].mxu0
        %v645 = vadd.f32 0.0, %v644
        %v646 = vpop.f32.mrb[0].mxu0
        %v647 = vadd.f32 0.0, %v646
        %648 = vmatprep.mubr.f32.mxu0 0.0
        %649 = vmatmul.mubr.f32.gmra.mrb[0].mxu0 %v531
        %v650 = vpop.f32.mrb[0].mxu0
        %v651 = vadd.f32 0.0, %v650
        %v652 = vpop.f32.mrb[0].mxu0
        %v653 = vadd.f32 0.0, %v652
        %654 = vmatprep.mubr.f32.mxu0 0.0
        %655 = vmatmul.mubr.f32.gmra.mrb[0].mxu0 %v534
        %v656 = vpop.f32.mrb[0].mxu0
        %v657 = vadd.f32 0.0, %v656
        %v658 = vpop.f32.mrb[0].mxu0
        %v659 = vadd.f32 0.0, %v658
        %660 = vmatprep.mubr.f32.mxu0 0.0
        %661 = vmatmul.mubr.f32.gmra.mrb[0].mxu0 %v537
        %v662 = vpop.f32.mrb[0].mxu0
        %v663 = vadd.f32 0.0, %v662
        %v664 = vpop.f32.mrb[0].mxu0
        %v665 = vadd.f32 0.0, %v664
        %666 = vmatprep.mubr.f32.mxu0 0.0
        %667 = vmatmul.mubr.f32.gmra.mrb[0].mxu0 %v540
        %v668 = vpop.f32.mrb[0].mxu0
        %v669 = vadd.f32 0.0, %v668
        %v670 = vpop.f32.mrb[0].mxu0
        %v671 = vadd.f32 0.0, %v670
        %672 = vmatprep.mubr.f32.mxu0 0.0
        %673 = vmatmul.mubr.f32.gmra.mrb[0].mxu0 %v543
        %v674 = vpop.f32.mrb[0].mxu0
        %v675 = vadd.f32 0.0, %v674
        %v676 = vpop.f32.mrb[0].mxu0
        %v677 = vadd.f32 0.0, %v676
        %678 = vmatprep.mubr.f32.mxu0 0.0
        %679 = vmatmul.mubr.f32.gmra.mrb[0].mxu0 %v546
        %v680 = vpop.f32.mrb[0].mxu0
        %v681 = vadd.f32 0.0, %v680
        %v682 = vpop.f32.mrb[0].mxu0
        %v683 = vadd.f32 0.0, %v682
        %684 = vmatprep.mubr.f32.mxu0 0.0
        %685 = vmatmul.mubr.f32.gmra.mrb[0].mxu0 %v549
        %v686 = vpop.f32.mrb[0].mxu0
        %v687 = vadd.f32 0.0, %v686
        %v688 = vpop.f32.mrb[0].mxu0
        %v689 = vadd.f32 0.0, %v688
        %690 = vmatprep.mubr.f32.mxu0 0.0
        %691 = vmatmul.mubr.f32.gmra.mrb[0].mxu0 %v552
        %v692 = vpop.f32.mrb[0].mxu0
        %v693 = vadd.f32 0.0, %v692
        %v694 = vpop.f32.mrb[0].mxu0
        %v695 = vadd.f32 0.0, %v694
        %696 = vmatprep.mubr.f32.mxu0 0.0
        %697 = vmatmul.mubr.f32.gmra.mrb[0].mxu0 %v555
        %v698 = vpop.f32.mrb[0].mxu0
        %v699 = vadd.f32 0.0, %v698
        %v700 = vpop.f32.mrb[0].mxu0
        %v701 = vadd.f32 0.0, %v700
        %702 = vmatprep.mubr.f32.mxu0 0.0
        %703 = vmatmul.mubr.f32.gmra.mrb[0].mxu0 %v558
        %v704 = vpop.f32.mrb[0].mxu0
        %v705 = vadd.f32 0.0, %v704
        %v706 = vpop.f32.mrb[0].mxu0
        %v707 = vadd.f32 0.0, %v706
        %708 = vmatprep.mubr.f32.mxu0 0.0
        %709 = vmatmul.mubr.f32.gmra.mrb[0].mxu0 %v561
        %v710 = vpop.f32.mrb[0].mxu0
        %v711 = vadd.f32 0.0, %v710
        %v712 = vpop.f32.mrb[0].mxu0
        %v713 = vadd.f32 0.0, %v712
        %714 = vmatprep.mubr.f32.mxu0 0.0
        %715 = vmatmul.mubr.f32.gmra.mrb[0].mxu0 %v564
        %v716 = vpop.f32.mrb[0].mxu0
        %v717 = vadd.f32 0.0, %v716
        %v718 = vpop.f32.mrb[0].mxu0
        %v719 = vadd.f32 0.0, %v718
        %720 = vmatprep.mubr.f32.mxu0 0.0
        %721 = vmatmul.mubr.f32.gmra.mrb[0].mxu0 %v567
        %v722 = vpop.f32.mrb[0].mxu0
        %v723 = vadd.f32 0.0, %v722
        %v724 = vpop.f32.mrb[0].mxu0
        %v725 = vadd.f32 0.0, %v724
        %726 = vmatprep.mubr.f32.mxu0 0.0
        %727 = vmatmul.mubr.f32.gmra.mrb[0].mxu0 %v570
        %v728 = vpop.f32.mrb[0].mxu0
        %v729 = vadd.f32 0.0, %v728
        %v730 = vpop.f32.mrb[0].mxu0
        %v731 = vadd.f32 0.0, %v730
        %732 = vdwg.mxu0
        %v733 = vmax.f32 %v639, %v641
        %734 = vmax.xlane.f32.xlu0 %v733
        %v735 = vpop.xlane.xlu0 %734
        %v736 = vmax.f32 %v645, %v647
        %737 = vmax.xlane.f32.xlu0 %v736
        %v738 = vpop.xlane.xlu0 %737
        %v739 = vmax.f32 %v651, %v653
        %740 = vmax.xlane.f32.xlu0 %v739
        %v741 = vpop.xlane.xlu0 %740
        %v742 = vmax.f32 %v657, %v659
        %743 = vmax.xlane.f32.xlu0 %v742
        %v744 = vpop.xlane.xlu0 %743
        %v745 = vmax.f32 %v663, %v665
        %746 = vmax.xlane.f32.xlu0 %v745
        %v747 = vpop.xlane.xlu0 %746
        %v748 = vmax.f32 %v669, %v671
        %749 = vmax.xlane.f32.xlu0 %v748
        %v750 = vpop.xlane.xlu0 %749
        %v751 = vmax.f32 %v675, %v677
        %752 = vmax.xlane.f32.xlu0 %v751
        %v753 = vpop.xlane.xlu0 %752
        %v754 = vmax.f32 %v681, %v683
        %755 = vmax.xlane.f32.xlu0 %v754
        %v756 = vpop.xlane.xlu0 %755
        %v757 = vmax.f32 %v687, %v689
        %758 = vmax.xlane.f32.xlu0 %v757
        %v759 = vpop.xlane.xlu0 %758
        %v760 = vmax.f32 %v693, %v695
        %761 = vmax.xlane.f32.xlu0 %v760
        %v762 = vpop.xlane.xlu0 %761
        %v763 = vmax.f32 %v699, %v701
        %764 = vmax.xlane.f32.xlu0 %v763
        %v765 = vpop.xlane.xlu0 %764
        %v766 = vmax.f32 %v705, %v707
        %767 = vmax.xlane.f32.xlu0 %v766
        %v768 = vpop.xlane.xlu0 %767
        %v769 = vmax.f32 %v711, %v713
        %770 = vmax.xlane.f32.xlu0 %v769
        %v771 = vpop.xlane.xlu0 %770
        %v772 = vmax.f32 %v717, %v719
        %773 = vmax.xlane.f32.xlu0 %v772
        %v774 = vpop.xlane.xlu0 %773
        %v775 = vmax.f32 %v723, %v725
        %776 = vmax.xlane.f32.xlu0 %v775
        %v777 = vpop.xlane.xlu0 %776
        %v778 = vmax.f32 %v729, %v731
        %779 = vmax.xlane.f32.xlu0 %v778
        %v780 = vpop.xlane.xlu0 %779
        %v781 = vsub.f32 %v639, %v735
        %v782 = vsub.f32 %v641, %v735
        %v783 = vsub.f32 %v645, %v738
        %v784 = vsub.f32 %v647, %v738
        %v785 = vsub.f32 %v651, %v741
        %v786 = vsub.f32 %v653, %v741
        %v787 = vsub.f32 %v657, %v744
        %v788 = vsub.f32 %v659, %v744
        %v789 = vsub.f32 %v663, %v747
        %v790 = vsub.f32 %v665, %v747
        %v791 = vsub.f32 %v669, %v750
        %v792 = vsub.f32 %v671, %v750
        %v793 = vsub.f32 %v675, %v753
        %v794 = vsub.f32 %v677, %v753
        %v795 = vsub.f32 %v681, %v756
        %v796 = vsub.f32 %v683, %v756
        %v797 = vsub.f32 %v687, %v759
        %v798 = vsub.f32 %v689, %v759
        %v799 = vsub.f32 %v693, %v762
        %v800 = vsub.f32 %v695, %v762
        %v801 = vsub.f32 %v699, %v765
        %v802 = vsub.f32 %v701, %v765
        %v803 = vsub.f32 %v705, %v768
        %v804 = vsub.f32 %v707, %v768
        %v805 = vsub.f32 %v711, %v771
        %v806 = vsub.f32 %v713, %v771
        %v807 = vsub.f32 %v717, %v774
        %v808 = vsub.f32 %v719, %v774
        %v809 = vsub.f32 %v723, %v777
        %v810 = vsub.f32 %v725, %v777
        %v811 = vsub.f32 %v729, %v780
        %v812 = vsub.f32 %v731, %v780
        %v813 = vmul.f32 %v781, 1.442695
        %v814 = vpow.pop %v813
        %v815 = vmul.f32 %v782, 1.442695
        %v816 = vpow.pop %v815
        %v817 = vmul.f32 %v783, 1.442695
        %v818 = vpow.pop %v817
        %v819 = vmul.f32 %v784, 1.442695
        %v820 = vpow.pop %v819
        %v821 = vmul.f32 %v785, 1.442695
        %v822 = vpow.pop %v821
        %v823 = vmul.f32 %v786, 1.442695
        %v824 = vpow.pop %v823
        %v825 = vmul.f32 %v787, 1.442695
        %v826 = vpow.pop %v825
        %v827 = vmul.f32 %v788, 1.442695
        %v828 = vpow.pop %v827
        %v829 = vmul.f32 %v789, 1.442695
        %v830 = vpow.pop %v829
        %v831 = vmul.f32 %v790, 1.442695
        %v832 = vpow.pop %v831
        %v833 = vmul.f32 %v791, 1.442695
        %v834 = vpow.pop %v833
        %v835 = vmul.f32 %v792, 1.442695
        %v836 = vpow.pop %v835
        %v837 = vmul.f32 %v793, 1.442695
        %v838 = vpow.pop %v837
        %v839 = vmul.f32 %v794, 1.442695
        %v840 = vpow.pop %v839
        %v841 = vmul.f32 %v795, 1.442695
        %v842 = vpow.pop %v841
        %v843 = vmul.f32 %v796, 1.442695
        %v844 = vpow.pop %v843
        %v845 = vmul.f32 %v797, 1.442695
        %v846 = vpow.pop %v845
        %v847 = vmul.f32 %v798, 1.442695
        %v848 = vpow.pop %v847
        %v849 = vmul.f32 %v799, 1.442695
        %v850 = vpow.pop %v849
        %v851 = vmul.f32 %v800, 1.442695
        %v852 = vpow.pop %v851
        %v853 = vmul.f32 %v801, 1.442695
        %v854 = vpow.pop %v853
        %v855 = vmul.f32 %v802, 1.442695
        %v856 = vpow.pop %v855
        %v857 = vmul.f32 %v803, 1.442695
        %v858 = vpow.pop %v857
        %v859 = vmul.f32 %v804, 1.442695
        %v860 = vpow.pop %v859
        %v861 = vmul.f32 %v805, 1.442695
        %v862 = vpow.pop %v861
        %v863 = vmul.f32 %v806, 1.442695
        %v864 = vpow.pop %v863
        %v865 = vmul.f32 %v807, 1.442695
        %v866 = vpow.pop %v865
        %v867 = vmul.f32 %v808, 1.442695
        %v868 = vpow.pop %v867
        %v869 = vmul.f32 %v809, 1.442695
        %v870 = vpow.pop %v869
        %v871 = vmul.f32 %v810, 1.442695
        %v872 = vpow.pop %v871
        %v873 = vmul.f32 %v811, 1.442695
        %v874 = vpow.pop %v873
        %v875 = vmul.f32 %v812, 1.442695
        %v876 = vpow.pop %v875
        %v877 = vpack.c.bf16 %v818, %v814
        %v878 = vpack.c.bf16 %v820, %v816
        %v879 = vpack.c.bf16 %v826, %v822
        %v880 = vpack.c.bf16 %v828, %v824
        %v881 = vpack.c.bf16 %v834, %v830
        %v882 = vpack.c.bf16 %v836, %v832
        %v883 = vpack.c.bf16 %v842, %v838
        %v884 = vpack.c.bf16 %v844, %v840
        %v885 = vpack.c.bf16 %v850, %v846
        %v886 = vpack.c.bf16 %v852, %v848
        %v887 = vpack.c.bf16 %v858, %v854
        %v888 = vpack.c.bf16 %v860, %v856
        %v889 = vpack.c.bf16 %v866, %v862
        %v890 = vpack.c.bf16 %v868, %v864
        %v891 = vpack.c.bf16 %v874, %v870
        %v892 = vpack.c.bf16 %v876, %v872
        %v893 = vld [vmem:[#allocation2 + $0x20] sm:$0xff]
        %v894 = vld [vmem:[#allocation2 + $0x28] sm:$0xff]
        %v895 = vld [vmem:[#allocation2 + $0x30] sm:$0xff]
        %v896 = vld [vmem:[#allocation2 + $0x38] sm:$0xff]
        %v897 = vld [vmem:[#allocation2 + $0x40] sm:$0x1]
        %v898 = vld [vmem:[#allocation2 + $0x48] sm:$0x1]
        %v899 = vpack.c.bf16 %v895, %v893
        %v900 = vpack.c.bf16 %v896, %v894
        %v901 = vpack.c.bf16 %v897, %v897
        %v902 = vpack.c.bf16 %v898, %v898
        %903 = vmatprep.subr.bf16.mxu0 %v878
        %904 = vmatpush1.bf16.xpose.msra.mxu0 %v877
        %905 = vmatprep.subr.bf16.mxu0 %v880
        %906 = vmatpush1.bf16.xpose.msra.mxu0 %v879
        %907 = vmatprep.subr.bf16.mxu0 %v882
        %908 = vmatpush1.bf16.xpose.msra.mxu0 %v881
        %909 = vmatprep.subr.bf16.mxu0 %v884
        %910 = vmatpush1.bf16.xpose.msra.mxu0 %v883
        %911 = vmatprep.subr.bf16.mxu0 %v886
        %912 = vmatpush1.bf16.xpose.msra.mxu0 %v885
        %913 = vmatprep.subr.bf16.mxu0 %v888
        %914 = vmatpush1.bf16.xpose.msra.mxu0 %v887
        %915 = vmatprep.subr.bf16.mxu0 %v890
        %916 = vmatpush1.bf16.xpose.msra.mxu0 %v889
        %917 = vmatprep.subr.bf16.mxu0 %v892
        %918 = vmatpush1.bf16.xpose.msra.mxu0 %v891
        %919 = vmatprep.subr.bf16.mxu0 0
        %920 = vmatpush1.bf16.xpose.msra.mxu0 0
        %921 = vmatprep.subr.bf16.mxu0 0
        %922 = vmatpush1.bf16.xpose.msra.mxu0 0
        %923 = vmatprep.subr.bf16.mxu0 0
        %924 = vmatpush1.bf16.xpose.msra.mxu0 0
        %925 = vmatprep.subr.bf16.mxu0 0
        %926 = vmatpush1.bf16.xpose.msra.mxu0 0
        %927 = vmatprep.subr.bf16.mxu0 0
        %928 = vmatpush1.bf16.xpose.msra.mxu0 0
        %929 = vmatprep.subr.bf16.mxu0 0
        %930 = vmatpush1.bf16.xpose.msra.mxu0 0
        %931 = vmatprep.subr.bf16.mxu0 0
        %932 = vmatpush1.bf16.xpose.msra.mxu0 0
        %933 = vmatprep.subr.bf16.mxu0 0
        %934 = vmatpush1.bf16.xpose.msra.mxu0 0
        %935 = vmatprep.mubr.bf16.mxu0 %v900
        %936 = vmatmul.mubr.bf16.gmra.mrb[0].mxu0 %v899
        %v937 = vpop.f32.mrb[0].mxu0
        %v938 = vadd.f32 0.0, %v937
        %v939 = vpop.f32.mrb[0].mxu0
        %v940 = vpop.f32.mrb[0].mxu0
        %v941 = vadd.f32 0.0, %v940
        %v942 = vpop.f32.mrb[0].mxu0
        %943 = vmatprep.mubr.bf16.mxu0 %v902
        %944 = vmatmul.mubr.bf16.gmra.mrb[0].mxu0 %v901
        %v945 = vpop.f32.mrb[0].mxu0
        %v946 = vadd.f32 0.0, %v945
        %v947 = vpop.f32.mrb[0].mxu0
        %v948 = vpop.f32.mrb[0].mxu0
        %v949 = vpop.f32.mrb[0].mxu0
        %950 = vdwg.mxu0
        %v951 = vrcp.pop %v946
        %v952 = vlaneseq
        %v953 = vshrl.u32 %v952, 7
        %v954 = vsub.s32 0, %v953
        %v955 = vrot.slane %v951, %v954
        %v956 = vmul.f32 %v938, %v955
        %v957 = vmul.f32 %v941, %v955
        %s958 = sld [smem:[#allocation3]]
        %v959 = vstv %s958
        %v960 = vmul.f32 %v959, %v956
        %v961 = vmul.f32 %v959, %v957
        %v962 = vld [vmem:[%s269] sm:$0xff]
        %v963 = vld [vmem:[%s269 + $0x8] sm:$0xff]
        %v964 = vadd.f32 %v960, %v962
        %v965 = vadd.f32 %v961, %v963
        %966 = vst [vmem:[%s300] sm:$0xff] %v964
        %967 = vst [vmem:[%s300 + $0x8] sm:$0xff] %v965
        %s968 = sand.u32 %s165, 1
        %s969 = scalar_lea.sflag [#allocation6], %s968
        %s970 = sand.u32 %s165, 1
        %s971 = smul.addr %s970, 16
        %s972 = scalar_lea.vmem [#allocation9], %s971
        // Predicated region
        $region53: #{tpu_custom_call.1} parent=39 // pred_check
          %p973 = pneg %p175
        $region54: #{tpu_custom_call.1} parent=39 // pred_check_branch
          %975 = sbr.rel (%p973) target = $region56
        $region55: #{tpu_custom_call.1} parent=39 // pred_region
          %s977 = ssub.s32 256, 256
          %978 = vsyncadd %s969, %s977
          %s979 = smul.addr %s30, 4
          %s980 = sadd.s32 %s31, %s979
          %s981 = smul.addr %s980, 128
          %s982 = scalar_lea.hbm %s5, %s981
          %s983 = sshll.u32 %s972, 4
          %s984 = int_to_ptr.vmem [resolvable:$true] %s983
          %989 = dma.vmem_to_hbm [thread:$0]  %s984, 256, %s982, %s969, 128, 256, 8
        $region56: #{tpu_custom_call.1} parent=39 // pred_fallthru
          _
      $region40: #{tpu_custom_call.1} parent=5 // pred_fallthru
        _
      %p990 = scmp.le.s32.totalorder 2, %s21
      // Predicated region
      $region57: #{tpu_custom_call.1} parent=5 // pred_check
        %p991 = pneg %p990
      $region58: #{tpu_custom_call.1} parent=5 // pred_check_branch
        %993 = sbr.rel (%p991) target = $region60
      $region59: #{tpu_custom_call.1} parent=5 // pred_region
        %s994 = ssub.s32 %s21, 2
        // Predicated region
        $region61: #{tpu_custom_call.1} parent=59 // pred_check
          %p995 = pneg %p181
        $region62: #{tpu_custom_call.1} parent=59 // pred_check_branch
          %997 = sbr.rel (%p995) target = $region64
        $region63: #{tpu_custom_call.1} parent=59 // pred_region
          %s998 = sand.u32 %s166, 1
          %s999 = scalar_lea.sflag [#allocation6], %s998
          %s1000 = sand.u32 %s166, 1
          %s1001 = smul.addr %s1000, 16
          %s1002 = scalar_lea.vmem [#allocation9], %s1001
          %1003 = dma.done %s999, 256
        $region64: #{tpu_custom_call.1} parent=59 // pred_fallthru
          _
      $region60: #{tpu_custom_call.1} parent=5 // pred_fallthru
        _
    $region6: #{tpu_custom_call.1} parent=1 // loop_footer
      %s25 = sadd.s32 1, %s21
    $region7: #{tpu_custom_call.1} parent=1 // loop_footer_branch
      %20 = sbr.rel target = $region3
    $region8: #{tpu_custom_call.1} parent=1 // loop_exit
      _
    %1004 = vsyncpa [#allocation5], 1
    %s1005 = scalar_lea.sflag [#allocation5], 1
    %1006 = vsyncpa %s1005, 1
    %1007 = vsyncpa [#allocation8], 1
    %s1008 = scalar_lea.sflag [#allocation8], 1
    %1009 = vsyncpa %s1008, 1
    %1010 = vsyncpa [#allocation6], 1
    %s1011 = scalar_lea.sflag [#allocation6], 1
    %1012 = vsyncpa %s1011, 1

</llo_original>
